<compile_context>
chip_gen: v6e
topology: v6e:2x2x1
jax: 0.10.0
libtpu: 0.0.40
codegen_flags: <defaults>
</compile_context>

<pallas_src>
import functools

import jax
import jax.numpy as jnp
from jax.experimental import pallas as pl
from jax.experimental.pallas import tpu as pltpu

LANE = 128  # vreg lane width


def packed_linear_kernel(x_ref, w_ref, b_ref, o_ref):
    # x_ref: [TB, 128] packed rows (32 original rows of 4 features each)
    # w_ref: [128, 128] block-diagonal kron(I_32, W^T), resident across the grid
    # b_ref: [1, 128]   bias tiled 32x, resident across the grid
    # o_ref: [TB, 128]  packed outputs
    o_ref[...] = (
        jnp.dot(x_ref[...], w_ref[...], preferred_element_type=jnp.float32)
        + b_ref[...]
    ).astype(o_ref.dtype)


def linear_pallas(x, w, b, *, block_rows=2048, min_rows_for_pallas=512):
    """Linear(4,4) forward.

    x: [B, F_in] f32
    w: [F_in, F_out] f32 (i.e. PyTorch weight transposed, so y = x @ w + b)
    b: [F_out] f32
    """
    B, F_in = x.shape
    F_out = w.shape[1]
    assert LANE % F_in == 0 and LANE % F_out == 0

    if B < min_rows_for_pallas:
        # Tiny batch: let XLA fuse it; a custom-call boundary would only hurt.
        return x @ w + b

    pack = LANE // F_in  # 32 original rows per packed row

    # --- lane-dense repack (wrapper-side, free row-major reshapes) ----------
    b_pad = pl.cdiv(B, pack) * pack
    if b_pad != B:
        x = jnp.pad(x, ((0, b_pad - B), (0, 0)))
    P = b_pad // pack
    x_packed = x.reshape(P, LANE)                       # [P, 128]

    w_big = jnp.kron(jnp.eye(pack, dtype=w.dtype), w)   # [128, 128] block-diag
    b_big = jnp.tile(b, pack).reshape(1, LANE)          # [1, 128]

    # --- tiling --------------------------------------------------------------
    tb = min(block_rows, P)
    if tb < P:
        tb = max(8, (tb // 8) * 8)  # (8,128) block constraint when not full-extent
    grid = (pl.cdiv(P, tb),)

    block_bytes = tb * LANE * 4
    vmem_bytes = 4 * block_bytes + LANE * LANE * 4 + (2 << 20)  # dbl-buf in+out + W + slack
    vmem_bytes = int(min(max(vmem_bytes, 32 << 20), 60 << 20))

    cost = pl.CostEstimate(
        flops=2 * P * LANE * LANE,
        transcendentals=0,
        bytes_accessed=int(2 * P * LANE * 4 + LANE * LANE * 4 + LANE * 4),
    )

    y_packed = pl.pallas_call(
        packed_linear_kernel,
        out_shape=jax.ShapeDtypeStruct((P, LANE), x.dtype),
        grid=grid,
        in_specs=[
            pl.BlockSpec((tb, LANE), lambda i: (i, 0)),       # x tiles over B only
            pl.BlockSpec((LANE, LANE), lambda i: (0, 0)),     # weight resident
            pl.BlockSpec((1, LANE), lambda i: (0, 0)),        # bias resident
        ],
        out_specs=pl.BlockSpec((tb, LANE), lambda i: (i, 0)),
        compiler_params=pltpu.CompilerParams(
            dimension_semantics=("parallel",),  # v7x: shard B-grid across 2 TCs
            vmem_limit_bytes=vmem_bytes,
        ),
        cost_estimate=cost,
    )(x_packed, w_big, b_big)

    return y_packed.reshape(b_pad, F_out)[:B]


if __name__ == "__main__":
    key = jax.random.PRNGKey(0)
    kw, kb, kx1, kx2 = jax.random.split(key, 4)

    F_in, F_out = 4, 4
    bound = 1.0 / (F_in ** 0.5)
    # PyTorch stores weight as [out, in]; kernel wants [in, out].
    w_torch_layout = jax.random.uniform(
        kw, (F_out, F_in), dtype=jnp.float32, minval=-bound, maxval=bound
    )
    bias = jax.random.uniform(
        kb, (F_out,), dtype=jnp.float32, minval=-bound, maxval=bound
    )
    w = w_torch_layout.T

    # 1) Small batch, Pallas path forced (single packed row, 1-step grid).
    x_small = jax.random.normal(kx1, (8, F_in), dtype=jnp.float32)
    y_small = linear_pallas(x_small, w, bias, min_rows_for_pallas=0)
    jax.block_until_ready(y_small)
    assert jnp.allclose(y_small, x_small @ w + bias, atol=1e-5, rtol=1e-5), \
        "small-B Pallas mismatch vs reference"

    # 2) Non-divisible batch: exercises wrapper padding + multi-step parallel grid.
    x_big = jax.random.normal(kx2, (4100, F_in), dtype=jnp.float32)
    y_big = linear_pallas(x_big, w, bias, block_rows=64, min_rows_for_pallas=0)
    jax.block_until_ready(y_big)
    assert jnp.allclose(y_big, x_big @ w + bias, atol=1e-5, rtol=1e-5), \
        "padded multi-block Pallas mismatch vs reference"

    # 3) Default routing: tiny batch bypasses Pallas (pure XLA).
    y_xla = linear_pallas(x_small, w, bias)
    jax.block_until_ready(y_xla)
    assert jnp.allclose(y_xla, x_small @ w + bias, atol=1e-5, rtol=1e-5), \
        "XLA fallback mismatch vs reference"

    print("KERNEL_OK")
</pallas_src>

<mosaic_0001>
module attributes {stable_mosaic.version = 11 : i64} {
  func.func @packed_linear_kernel(%arg0: i32, %arg1: memref<1x128xf32, #tpu.memory_space<vmem>>, %arg2: memref<128x128xf32, #tpu.memory_space<vmem>>, %arg3: memref<1x128xf32, #tpu.memory_space<vmem>>, %arg4: memref<1x128xf32, #tpu.memory_space<vmem>>) attributes {dimension_semantics = [#tpu.dimension_semantics<parallel>], iteration_bounds = array<i64: 1>, scalar_prefetch = 0 : i64, scratch_operands = 0 : i64, tpu.core_type = #tpu.core_type<tc>, window_params = [{transform_indices = @transform_0, window_bounds = array<i64: 1, 128>}, {pipeline_mode = #tpu.pipeline_mode<synchronous>, transform_indices = @transform_1, window_bounds = array<i64: 128, 128>}, {pipeline_mode = #tpu.pipeline_mode<synchronous>, transform_indices = @transform_2, window_bounds = array<i64: 1, 128>}, {transform_indices = @transform_3, window_bounds = array<i64: 1, 128>}]} {
    %c0 = arith.constant 0 : index
    %c0_0 = arith.constant 0 : index
    %0 = vector.load %arg1[%c0, %c0_0] : memref<1x128xf32, #tpu.memory_space<vmem>>, vector<1x128xf32>
    %c0_1 = arith.constant 0 : index
    %c0_2 = arith.constant 0 : index
    %1 = vector.load %arg2[%c0_1, %c0_2] : memref<128x128xf32, #tpu.memory_space<vmem>>, vector<128x128xf32>
    %cst = arith.constant dense<0.000000e+00> : vector<1x128xf32>
    %2 = tpu.matmul %0, %1, %cst {dimension_numbers = #tpu.dot_dimension_numbers<[1], [0], [0], [1], [0, 0, 1, 1], [], []>} : vector<1x128xf32>, vector<128x128xf32>, vector<1x128xf32> -> vector<1x128xf32>
    %c0_3 = arith.constant 0 : index
    %c0_4 = arith.constant 0 : index
    %3 = vector.load %arg3[%c0_3, %c0_4] : memref<1x128xf32, #tpu.memory_space<vmem>>, vector<1x128xf32>
    %4 = arith.addf %2, %3 : vector<1x128xf32>
    %c0_5 = arith.constant 0 : index
    %c0_6 = arith.constant 0 : index
    %5 = vector.load %arg4[%c0_5, %c0_6] : memref<1x128xf32, #tpu.memory_space<vmem>>, vector<1x128xf32>
    tpu.vector_store %arg4[%c0_5, %c0_6], %4 {strides = array<i32>} : memref<1x128xf32, #tpu.memory_space<vmem>>, vector<1x128xf32>,
    return
  }
  func.func @transform_0(%arg0: i32) -> (i32, i32) {
    %c0_i32 = arith.constant 0 : i32
    %c0_i32_0 = arith.constant 0 : i32
    return %arg0, %c0_i32 : i32, i32
  }
  func.func @transform_1(%arg0: i32) -> (i32, i32) {
    %c0_i32 = arith.constant 0 : i32
    %c0_i32_0 = arith.constant 0 : i32
    %c0_i32_1 = arith.constant 0 : i32
    return %c0_i32, %c0_i32_0 : i32, i32
  }
  func.func @transform_2(%arg0: i32) -> (i32, i32) {
    %c0_i32 = arith.constant 0 : i32
    %c0_i32_0 = arith.constant 0 : i32
    %c0_i32_1 = arith.constant 0 : i32
    return %c0_i32, %c0_i32_0 : i32, i32
  }
  func.func @transform_3(%arg0: i32) -> (i32, i32) {
    %c0_i32 = arith.constant 0 : i32
    %c0_i32_0 = arith.constant 0 : i32
    return %arg0, %c0_i32 : i32, i32
  }
}

</mosaic_0001>

<llo_original>
// kernel: tpu_custom_call.1
$region0: #{tpu_custom_call.1}
  #allocation0 [shape = 'u32[]', space=smem, size = 0x4, offset = 0x4, fixed_abs, tag = 'smem constant byte address 0x4 - core index']
  #allocation1 [shape = 'u32[144,128]{1,0:T(1,128)}', space=vmem, size = 0x12000, scoped, tag = 'internal scratch']
  %s0 = inlined_call_operand.hbm [shape: f32[1,128], index: 0, kind: input, shape index: {}]
  %s1 = inlined_call_operand.hbm [shape: f32[128,128], index: 1, kind: input, shape index: {}]
  %s2 = inlined_call_operand.vmem [shape: f32[1,128], index: 2, kind: input, shape index: {}]
  %s3 = inlined_call_operand.hbm [shape: f32[1,128], index: 3, kind: output, shape index: {}]
  %s4 = sld [smem:[#allocation0]]
  $region30: #{tpu_custom_call.1} parent=0
    _
  %s6 = ssub.s32 1, %s4
  %s7 = scalar_select 0, %s6, %s4
  $region1: #{tpu_custom_call.1} parent=0
    #allocation2 [shape = 'u8[512]{0}', space=vmem, size = 0x400, scoped, tag = 'input window, operand 0, single buffered']
    #allocation3 [shape = 's32[1]{0}', space=sflag, size = 0x4, scoped, tag = 'scoped memory for tpu_custom_call.1']
    #allocation4 [shape = 's32[1]{0}', space=sflag, size = 0x4, scoped, tag = 'scoped memory for tpu_custom_call.1']
    #allocation5 [shape = 'u8[65536]{0}', space=vmem, size = 0x10000, scoped, tag = 'input window, operand 1, single buffered']
    #allocation6 [shape = 's32[1]{0}', space=sflag, size = 0x4, scoped, tag = 'scoped memory for tpu_custom_call.1']
    #allocation7 [shape = 'u8[512]{0}', space=vmem, size = 0x400, scoped, tag = 'output window, operand 0, single buffered']
    %8 = vsyncpa [#allocation3], 0
    %9 = vsyncpa [#allocation6], 0
    %10 = vsyncpa [#allocation4], 0
    // Predicated region
    $region2: #{tpu_custom_call.1} parent=1 // pred_check
      _
    $region3: #{tpu_custom_call.1} parent=1 // pred_check_branch
      %12 = sbr.rel (0) target = $region5
    $region4: #{tpu_custom_call.1} parent=1 // pred_region
      %s14 = ssub.s32 16, 16
      %15 = vsyncadd [#allocation3], %s14
      %s17 = sshll.u32 [#allocation2], 4
      %s18 = int_to_ptr.vmem [resolvable:$true] %s17
      %20 = dma.hbm_to_vmem [thread:$0]  %s0, 16, %s18, [#allocation3]
    $region5: #{tpu_custom_call.1} parent=1 // pred_fallthru
      _
    // Predicated region
    $region6: #{tpu_custom_call.1} parent=1 // pred_check
      _
    $region7: #{tpu_custom_call.1} parent=1 // pred_check_branch
      %22 = sbr.rel (0) target = $region9
    $region8: #{tpu_custom_call.1} parent=1 // pred_region
      %s24 = ssub.s32 2048, 2048
      %25 = vsyncadd [#allocation6], %s24
      %s26 = sshll.u32 [#allocation5], 4
      %s27 = int_to_ptr.vmem [resolvable:$true] %s26
      %32 = dma.hbm_to_vmem [thread:$0]  %s1, 2048, %s27, [#allocation6], 128, 128, 8
    $region9: #{tpu_custom_call.1} parent=1 // pred_fallthru
      _
    // Predicated region
    $region10: #{tpu_custom_call.1} parent=1 // pred_check
      _
    $region11: #{tpu_custom_call.1} parent=1 // pred_check_branch
      %34 = sbr.rel (0) target = $region13
    $region12: #{tpu_custom_call.1} parent=1 // pred_region
      _
    $region13: #{tpu_custom_call.1} parent=1 // pred_fallthru
      _
    // Predicated region
    $region14: #{tpu_custom_call.1} parent=1 // pred_check
      _
    $region15: #{tpu_custom_call.1} parent=1 // pred_check_branch
      %36 = sbr.rel (0) target = $region17
    $region16: #{tpu_custom_call.1} parent=1 // pred_region
      %37 = dma.done [#allocation3], 16
    $region17: #{tpu_custom_call.1} parent=1 // pred_fallthru
      _
    // Predicated region
    $region18: #{tpu_custom_call.1} parent=1 // pred_check
      _
    $region19: #{tpu_custom_call.1} parent=1 // pred_check_branch
      %39 = sbr.rel (0) target = $region21
    $region20: #{tpu_custom_call.1} parent=1 // pred_region
      %40 = dma.done [#allocation6], 2048
    $region21: #{tpu_custom_call.1} parent=1 // pred_fallthru
      _
    %v41 = vld [vmem:[#allocation2] sm:$0x1]
    %v42 = vld [vmem:[#allocation5] sm:$0xff]
    %v43 = vld [vmem:[#allocation5 + $0x8] sm:$0xff]
    %v44 = vld [vmem:[#allocation5 + $0x10] sm:$0xff]
    %v45 = vld [vmem:[#allocation5 + $0x18] sm:$0xff]
    %v46 = vld [vmem:[#allocation5 + $0x20] sm:$0xff]
    %v47 = vld [vmem:[#allocation5 + $0x28] sm:$0xff]
    %v48 = vld [vmem:[#allocation5 + $0x30] sm:$0xff]
    %v49 = vld [vmem:[#allocation5 + $0x38] sm:$0xff]
    %v50 = vld [vmem:[#allocation5 + $0x40] sm:$0xff]
    %v51 = vld [vmem:[#allocation5 + $0x48] sm:$0xff]
    %v52 = vld [vmem:[#allocation5 + $0x50] sm:$0xff]
    %v53 = vld [vmem:[#allocation5 + $0x58] sm:$0xff]
    %v54 = vld [vmem:[#allocation5 + $0x60] sm:$0xff]
    %v55 = vld [vmem:[#allocation5 + $0x68] sm:$0xff]
    %v56 = vld [vmem:[#allocation5 + $0x70] sm:$0xff]
    %v57 = vld [vmem:[#allocation5 + $0x78] sm:$0xff]
    %v58 = vld [vmem:[%s2] sm:$0x1]
    %59 = vmatprep.subr.mxu0 0.0
    %60 = vmatpush1.msra.mxu0 %v57
    %61 = vmatprep.subr.mxu0 0.0
    %62 = vmatpush1.msra.mxu0 %v56
    %63 = vmatprep.subr.mxu0 0.0
    %64 = vmatpush1.msra.mxu0 %v55
    %65 = vmatprep.subr.mxu0 0.0
    %66 = vmatpush1.msra.mxu0 %v54
    %67 = vmatprep.subr.mxu0 0.0
    %68 = vmatpush1.msra.mxu0 %v53
    %69 = vmatprep.subr.mxu0 0.0
    %70 = vmatpush1.msra.mxu0 %v52
    %71 = vmatprep.subr.mxu0 0.0
    %72 = vmatpush1.msra.mxu0 %v51
    %73 = vmatprep.subr.mxu0 0.0
    %74 = vmatpush1.msra.mxu0 %v50
    %75 = vmatprep.subr.mxu0 0.0
    %76 = vmatpush1.msra.mxu0 %v49
    %77 = vmatprep.subr.mxu0 0.0
    %78 = vmatpush1.msra.mxu0 %v48
    %79 = vmatprep.subr.mxu0 0.0
    %80 = vmatpush1.msra.mxu0 %v47
    %81 = vmatprep.subr.mxu0 0.0
    %82 = vmatpush1.msra.mxu0 %v46
    %83 = vmatprep.subr.mxu0 0.0
    %84 = vmatpush1.msra.mxu0 %v45
    %85 = vmatprep.subr.mxu0 0.0
    %86 = vmatpush1.msra.mxu0 %v44
    %87 = vmatprep.subr.mxu0 0.0
    %88 = vmatpush1.msra.mxu0 %v43
    %89 = vmatprep.subr.mxu0 0.0
    %90 = vmatpush1.msra.mxu0 %v42
    %91 = vmatprep.subr.mxu0 0.0
    %92 = vmatpush2.msra.mxu0 0.0
    %93 = vmatprep.subr.mxu0 0.0
    %94 = vmatpush2.msra.mxu0 0.0
    %95 = vmatprep.subr.mxu0 0.0
    %96 = vmatpush2.msra.mxu0 0.0
    %97 = vmatprep.subr.mxu0 0.0
    %98 = vmatpush2.msra.mxu0 0.0
    %99 = vmatprep.subr.mxu0 0.0
    %100 = vmatpush2.msra.mxu0 0.0
    %101 = vmatprep.subr.mxu0 0.0
    %102 = vmatpush2.msra.mxu0 0.0
    %103 = vmatprep.subr.mxu0 0.0
    %104 = vmatpush2.msra.mxu0 0.0
    %105 = vmatprep.subr.mxu0 0.0
    %106 = vmatpush2.msra.mxu0 0.0
    %107 = vmatprep.subr.mxu0 0.0
    %108 = vmatpush2.msra.mxu0 0.0
    %109 = vmatprep.subr.mxu0 0.0
    %110 = vmatpush2.msra.mxu0 0.0
    %111 = vmatprep.subr.mxu0 0.0
    %112 = vmatpush2.msra.mxu0 0.0
    %113 = vmatprep.subr.mxu0 0.0
    %114 = vmatpush2.msra.mxu0 0.0
    %115 = vmatprep.subr.mxu0 0.0
    %116 = vmatpush2.msra.mxu0 0.0
    %117 = vmatprep.subr.mxu0 0.0
    %118 = vmatpush2.msra.mxu0 0.0
    %119 = vmatprep.subr.mxu0 0.0
    %120 = vmatpush2.msra.mxu0 0.0
    %121 = vmatprep.subr.mxu0 0.0
    %122 = vmatpush2.msra.mxu0 0.0
    %123 = vmatprep.mubr.f32.mxu0 0.0
    %124 = vmatmul.mubr.f32.gmra.mxu0 %v41
    %v125 = vpop.f32.mrf.mxu0
    %v126 = vadd.f32 %v58, %v125
    %v127 = vpop.f32.mrf.mxu0
    %128 = vdwg.mxu0
    %129 = vst [vmem:[#allocation7] sm:$0x1] %v126
    // Predicated region
    $region22: #{tpu_custom_call.1} parent=1 // pred_check
      _
    $region23: #{tpu_custom_call.1} parent=1 // pred_check_branch
      %131 = sbr.rel (0) target = $region25
    $region24: #{tpu_custom_call.1} parent=1 // pred_region
      %s133 = ssub.s32 16, 16
      %134 = vsyncadd [#allocation4], %s133
      %s136 = sshll.u32 [#allocation7], 4
      %s137 = int_to_ptr.vmem [resolvable:$true] %s136
      %139 = dma.vmem_to_hbm [thread:$0]  %s137, 16, %s3, [#allocation4]
    $region25: #{tpu_custom_call.1} parent=1 // pred_fallthru
      _
    // Predicated region
    $region26: #{tpu_custom_call.1} parent=1 // pred_check
      _
    $region27: #{tpu_custom_call.1} parent=1 // pred_check_branch
      %141 = sbr.rel (0) target = $region29
    $region28: #{tpu_custom_call.1} parent=1 // pred_region
      %142 = dma.done [#allocation4], 16
    $region29: #{tpu_custom_call.1} parent=1 // pred_fallthru
      _
    %143 = vsyncpa [#allocation3], 1
    %144 = vsyncpa [#allocation6], 1
    %145 = vsyncpa [#allocation4], 1

</llo_original>
